<compile_context>
chip_gen: v5e
topology: v5e:2x2
jax: 0.10.0
libtpu: 0.0.40
codegen_flags: <defaults>
</compile_context>

<pallas_src>
import math

import jax
import jax.numpy as jnp
from jax import lax
from jax.experimental import pallas as pl
from jax.experimental.pallas import tpu as pltpu


def _round_up(x: int, m: int) -> int:
    return ((x + m - 1) // m) * m


def _pick_tile(dim: int, want: int, granule: int) -> int:
    """Pick a tile size: multiple of `granule`, <= `want`.

    Prefers the largest such value that divides the granule-aligned dim (so
    the operand needs no padding beyond alignment); falls back to `want` when
    the best divisor would shrink the tile more than 4x (then we pad).
    """
    aligned = _round_up(max(dim, 1), granule)
    want = min(_round_up(want, granule), aligned)
    best = granule
    for t in range(granule, want + 1, granule):
        if aligned % t == 0:
            best = t
    if best * 4 >= want:
        return best
    return want


def _make_linear_kernel(has_bias: bool, acc_is_out: bool):
    """Build a kernel variant.

    has_bias:   bias operand present (added in f32 in the epilogue).
    acc_is_out: output dtype is f32 -> accumulate directly into o_ref and
                skip the f32 scratch + epilogue cast.
    """

    def kernel(*refs):
        if has_bias:
            x_ref, w_ref, b_ref = refs[:3]
            rest = refs[3:]
        else:
            x_ref, w_ref = refs[:2]
            rest = refs[2:]
        if acc_is_out:
            (o_ref,) = rest
            acc_ref = o_ref
        else:
            o_ref, acc_ref = rest

        k = pl.program_id(2)

        @pl.when(k == 0)
        def _():
            acc_ref[...] = jnp.zeros_like(acc_ref)

        # x @ W^T : contract the last dim of both operands (MXU-native NT
        # form, same contraction the flash-attention kernels use -> no
        # per-tile relayout of the big (tn, tk) weight tile).
        acc_ref[...] += lax.dot_general(
            x_ref[...],
            w_ref[...],
            dimension_numbers=(((1,), (1,)), ((), ())),
            preferred_element_type=jnp.float32,
        )

        if acc_is_out:
            if has_bias:
                @pl.when(k == pl.num_programs(2) - 1)
                def _():
                    o_ref[...] += b_ref[...]
        else:
            @pl.when(k == pl.num_programs(2) - 1)
            def _():
                acc = acc_ref[...]
                if has_bias:
                    acc = acc + b_ref[...]
                o_ref[...] = acc.astype(o_ref.dtype)

    return kernel


def efficient_fake_quant_linear(x, weight, bias=None, *, tm=512, tn=1024, tk=512):
    """Pallas equivalent of EffcientFakeQuantLinear().forward(x).

    x:      (*batch, in_features)
    weight: (out_features, in_features)
    bias:   (out_features,) or None
    """
    orig_shape = x.shape
    K = orig_shape[-1]
    N, K2 = weight.shape
    assert K == K2, f"in_features mismatch: {K} vs {K2}"
    M = math.prod(orig_shape[:-1]) if len(orig_shape) > 1 else 1

    # ---- dtype policy -----------------------------------------------------
    # Output follows F.linear's result dtype; MXU operands stay narrow
    # (bf16/f16) when the (fake-quant) weight is narrow -- never promote the
    # matmul operands to f32.  Accumulation is always f32.
    out_dtype = jnp.result_type(x.dtype, weight.dtype)
    if not jnp.issubdtype(out_dtype, jnp.floating):
        # No integer MXU path; f32 compute is exact for int8/int16 ranges
        # (not for large int32 values, acceptable for this module).
        out_dtype = jnp.float32

    def _narrow_float(dt):
        return jnp.issubdtype(dt, jnp.floating) and jnp.dtype(dt).itemsize < 4

    if _narrow_float(weight.dtype):
        if jnp.dtype(weight.dtype).itemsize == 1:
            compute_dtype = jnp.bfloat16  # fp8 weights: upcast once (see TODO)
        else:
            compute_dtype = weight.dtype  # bf16 / f16: feed the MXU directly
    elif _narrow_float(x.dtype):
        compute_dtype = x.dtype
    else:
        compute_dtype = jnp.float32

    acc_is_out = (jnp.dtype(out_dtype) == jnp.dtype(jnp.float32))
    has_bias = bias is not None

    c_size = jnp.dtype(compute_dtype).itemsize
    o_size = jnp.dtype(out_dtype).itemsize

    # ---- tiling -----------------------------------------------------------
    # Sublane packing for the M (second-minor) axis: 8 for f32, 16 for bf16,
    # 32 for 8-bit -- keeps output stores unmasked even for decode-sized M.
    m_granule = max(8, 32 // o_size, 32 // c_size)

    tm = _pick_tile(M, tm, m_granule)
    tn = _pick_tile(N, tn, 128)
    tk = _pick_tile(K, tk, 128)

    # Fold a 2-step reduction into one (init/finalize + pipeline warm-up would
    # dominate it); tk stays <= 2x the requested tile.
    if _round_up(K, tk) // tk == 2:
        tk = _round_up(K, tk)

    Mp, Np, Kp = _round_up(M, tm), _round_up(N, tn), _round_up(K, tk)
    grid = (Mp // tm, Np // tn, Kp // tk)

    # ---- operand prep (guards keep the hot path copy-free when aligned) ----
    x2d = x.reshape(M, K)
    if x2d.dtype != compute_dtype:
        x2d = x2d.astype(compute_dtype)
    if (Mp, Kp) != (M, K):
        x2d = jnp.pad(x2d, ((0, Mp - M), (0, Kp - K)))  # K zero-pad keeps the
        # reduction exact -- do not drop without masking the edge blocks.

    w = weight
    if w.dtype != compute_dtype:
        w = w.astype(compute_dtype)
    if (Np, Kp) != (N, K):
        w = jnp.pad(w, ((0, Np - N), (0, Kp - K)))

    operands = [x2d, w]
    in_specs = [
        pl.BlockSpec((tm, tk), lambda i, j, k: (i, k)),   # x tile
        pl.BlockSpec((tn, tk), lambda i, j, k: (j, k)),   # weight tile
    ]
    if has_bias:
        b = bias.reshape(1, N).astype(jnp.float32)        # keep bias f32
        if Np != N:
            b = jnp.pad(b, ((0, 0), (0, Np - N)))
        operands.append(b)
        in_specs.append(pl.BlockSpec((1, tn), lambda i, j, k: (0, j)))

    scratch_shapes = [] if acc_is_out else [pltpu.VMEM((tm, tn), jnp.float32)]

    # ---- cost & VMEM budget -------------------------------------------------
    cost = pl.CostEstimate(
        flops=2 * M * N * K,
        transcendentals=0,
        bytes_accessed=(
            Mp * Kp * c_size * (Np // tn)        # x re-streamed per N tile
            + Np * Kp * c_size * (Mp // tm)      # W re-streamed per M tile
            + Mp * Np * o_size                   # output written once
            + (Np * 4 if has_bias else 0)
        ),
    )

    vmem_need = 2 * (tm * tk * c_size + tn * tk * c_size + tm * tn * o_size
                     + (tn * 4 if has_bias else 0))
    if not acc_is_out:
        vmem_need += tm * tn * 4
    # Default tiles need < ~12 MiB; cap near 48 MiB so the same config is safe
    # on v7x (64 MiB physical per TC) as well as v5e/v6e (128 MiB).
    vmem_limit = max(48 * 1024 * 1024, int(vmem_need * 2))

    out = pl.pallas_call(
        _make_linear_kernel(has_bias, acc_is_out),
        out_shape=jax.ShapeDtypeStruct((Mp, Np), out_dtype),
        grid_spec=pltpu.PrefetchScalarGridSpec(
            num_scalar_prefetch=0,
            grid=grid,
            in_specs=in_specs,
            out_specs=pl.BlockSpec((tm, tn), lambda i, j, k: (i, j)),
            scratch_shapes=scratch_shapes,
        ),
        compiler_params=pltpu.CompilerParams(
            # M/N independent (megacore/v7x 2-TC shardable), K is reduction.
            dimension_semantics=("parallel", "parallel", "arbitrary"),
            vmem_limit_bytes=vmem_limit,
        ),
        cost_estimate=cost,
    )(*operands)

    out = out[:M, :N]
    return out.reshape(orig_shape[:-1] + (N,))


if __name__ == "__main__":
    key = jax.random.PRNGKey(0)
    kx, kw, kb = jax.random.split(key, 3)

    # Small linear-layer shapes: batch=2, seq=8, in_features=32, out_features=64.
    B, S, IN, OUT = 2, 8, 32, 64
    x = jax.random.normal(kx, (B, S, IN), dtype=jnp.float32)
    weight = jax.random.normal(kw, (OUT, IN), dtype=jnp.float32) * 0.1
    bias = jax.random.normal(kb, (OUT,), dtype=jnp.float32)

    # f32 weights -> exact f32 path.
    out = jax.block_until_ready(efficient_fake_quant_linear(x, weight, bias))
    ref = jnp.einsum("bsk,nk->bsn", x, weight) + bias
    assert out.shape == ref.shape, (out.shape, ref.shape)
    assert jnp.allclose(out, ref, atol=1e-4, rtol=1e-4), "mismatch vs reference"

    # No-bias path (bias-less kernel variant).
    out_nb = jax.block_until_ready(efficient_fake_quant_linear(x, weight, None))
    ref_nb = jnp.einsum("bsk,nk->bsn", x, weight)
    assert jnp.allclose(out_nb, ref_nb, atol=1e-4, rtol=1e-4), "no-bias mismatch"

    # bf16 fake-quant weights: bf16 MXU operands, f32 accumulation, f32 output.
    w_bf16 = weight.astype(jnp.bfloat16)
    out_bf = jax.block_until_ready(efficient_fake_quant_linear(x, w_bf16, bias))
    ref_bf = jnp.einsum(
        "bsk,nk->bsn",
        x.astype(jnp.bfloat16).astype(jnp.float32),
        w_bf16.astype(jnp.float32),
    ) + bias
    assert out_bf.dtype == jnp.float32, out_bf.dtype
    assert jnp.allclose(out_bf, ref_bf, atol=1e-3, rtol=1e-3), "bf16 path mismatch"

    print("KERNEL_OK")
</pallas_src>

<mosaic_0001>
module attributes {stable_mosaic.version = 11 : i64} {
  func.func @kernel(%arg0: i32, %arg1: i32, %arg2: i32, %arg3: memref<16x128xf32, #tpu.memory_space<vmem>>, %arg4: memref<128x128xf32, #tpu.memory_space<vmem>>, %arg5: memref<1x128xf32, #tpu.memory_space<vmem>>, %arg6: memref<16x128xf32, #tpu.memory_space<vmem>>) attributes {dimension_semantics = [#tpu.dimension_semantics<parallel>, #tpu.dimension_semantics<parallel>, #tpu.dimension_semantics<arbitrary>], iteration_bounds = array<i64: 1, 1, 1>, scalar_prefetch = 0 : i64, scratch_operands = 0 : i64, tpu.core_type = #tpu.core_type<tc>, window_params = [{transform_indices = @transform_0, window_bounds = array<i64: 16, 128>}, {transform_indices = @transform_1, window_bounds = array<i64: 128, 128>}, {transform_indices = @transform_2, window_bounds = array<i64: 1, 128>}, {transform_indices = @transform_3, window_bounds = array<i64: 16, 128>}]} {
    %c0_i32 = arith.constant 0 : i32
    %0 = arith.cmpi eq, %arg2, %c0_i32 : i32
    %1 = arith.extui %0 : i1 to i32
    %c0_i32_0 = arith.constant 0 : i32
    %2 = arith.cmpi ne, %1, %c0_i32_0 : i32
    scf.if %2 {
      %cst_10 = arith.constant 0.000000e+00 : f32
      %12 = vector.broadcast %cst_10 : f32 to vector<16x128xf32>
      %c0_11 = arith.constant 0 : index
      %c0_12 = arith.constant 0 : index
      %13 = vector.load %arg6[%c0_11, %c0_12] : memref<16x128xf32, #tpu.memory_space<vmem>>, vector<16x128xf32>
      tpu.vector_store %arg6[%c0_11, %c0_12], %12 {strides = array<i32>} : memref<16x128xf32, #tpu.memory_space<vmem>>, vector<16x128xf32>,
    } else {
    }
    %c0 = arith.constant 0 : index
    %c0_1 = arith.constant 0 : index
    %3 = vector.load %arg6[%c0, %c0_1] : memref<16x128xf32, #tpu.memory_space<vmem>>, vector<16x128xf32>
    %c0_2 = arith.constant 0 : index
    %c0_3 = arith.constant 0 : index
    %4 = vector.load %arg3[%c0_2, %c0_3] : memref<16x128xf32, #tpu.memory_space<vmem>>, vector<16x128xf32>
    %c0_4 = arith.constant 0 : index
    %c0_5 = arith.constant 0 : index
    %5 = vector.load %arg4[%c0_4, %c0_5] : memref<128x128xf32, #tpu.memory_space<vmem>>, vector<128x128xf32>
    %cst = arith.constant dense<0.000000e+00> : vector<16x128xf32>
    %6 = tpu.matmul %4, %5, %cst {dimension_numbers = #tpu.dot_dimension_numbers<[1], [1], [0], [0], [0, 0, 1, 0], [], []>} : vector<16x128xf32>, vector<128x128xf32>, vector<16x128xf32> -> vector<16x128xf32>
    %7 = arith.addf %3, %6 : vector<16x128xf32>
    %c0_6 = arith.constant 0 : index
    %c0_7 = arith.constant 0 : index
    %8 = vector.load %arg6[%c0_6, %c0_7] : memref<16x128xf32, #tpu.memory_space<vmem>>, vector<16x128xf32>
    tpu.vector_store %arg6[%c0_6, %c0_7], %7 {strides = array<i32>} : memref<16x128xf32, #tpu.memory_space<vmem>>, vector<16x128xf32>,
    %c0_i32_8 = arith.constant 0 : i32
    %9 = arith.cmpi eq, %arg2, %c0_i32_8 : i32
    %10 = arith.extui %9 : i1 to i32
    %c0_i32_9 = arith.constant 0 : i32
    %11 = arith.cmpi ne, %10, %c0_i32_9 : i32
    scf.if %11 {
      %c0_10 = arith.constant 0 : index
      %c0_11 = arith.constant 0 : index
      %12 = vector.load %arg6[%c0_10, %c0_11] : memref<16x128xf32, #tpu.memory_space<vmem>>, vector<16x128xf32>
      %c0_12 = arith.constant 0 : index
      %c0_13 = arith.constant 0 : index
      %13 = vector.load %arg5[%c0_12, %c0_13] : memref<1x128xf32, #tpu.memory_space<vmem>>, vector<1x128xf32>
      %14 = vector.broadcast %13 : vector<1x128xf32> to vector<16x128xf32>
      %15 = arith.addf %12, %14 : vector<16x128xf32>
      %c0_14 = arith.constant 0 : index
      %c0_15 = arith.constant 0 : index
      %16 = vector.load %arg6[%c0_14, %c0_15] : memref<16x128xf32, #tpu.memory_space<vmem>>, vector<16x128xf32>
      tpu.vector_store %arg6[%c0_14, %c0_15], %15 {strides = array<i32>} : memref<16x128xf32, #tpu.memory_space<vmem>>, vector<16x128xf32>,
    } else {
    }
    return
  }
  func.func @transform_0(%arg0: i32, %arg1: i32, %arg2: i32) -> (i32, i32) {
    %c0_i32 = arith.constant 0 : i32
    return %arg0, %arg2 : i32, i32
  }
  func.func @transform_1(%arg0: i32, %arg1: i32, %arg2: i32) -> (i32, i32) {
    %c0_i32 = arith.constant 0 : i32
    return %arg1, %arg2 : i32, i32
  }
  func.func @transform_2(%arg0: i32, %arg1: i32, %arg2: i32) -> (i32, i32) {
    %c0_i32 = arith.constant 0 : i32
    %c0_i32_0 = arith.constant 0 : i32
    return %c0_i32, %arg1 : i32, i32
  }
  func.func @transform_3(%arg0: i32, %arg1: i32, %arg2: i32) -> (i32, i32) {
    %c0_i32 = arith.constant 0 : i32
    return %arg0, %arg1 : i32, i32
  }
}

</mosaic_0001>

<llo_original>
// kernel: tpu_custom_call.1
$region0: #{tpu_custom_call.1}
  #allocation0 [shape = 'u32[]', space=smem, size = 0x4, offset = 0x4, fixed_abs, tag = 'smem constant byte address 0x4 - core index']
  #allocation1 [shape = 'u32[72,128]{1,0:T(1,128)}', space=vmem, size = 0x9000, scoped, tag = 'internal scratch']
  %s0 = inlined_call_operand.hbm [shape: f32[16,128], index: 0, kind: input, shape index: {}]
  %s1 = inlined_call_operand.hbm [shape: f32[128,128], index: 1, kind: input, shape index: {}]
  %s2 = inlined_call_operand.vmem [shape: f32[1,128], index: 2, kind: input, shape index: {}]
  %s3 = inlined_call_operand.hbm [shape: f32[16,128], index: 3, kind: output, shape index: {}]
  %s4 = sld [smem:[#allocation0]]
  $region38: #{tpu_custom_call.1} parent=0
    _
  %s6 = ssub.s32 1, %s4
  %s7 = scalar_select 0, %s6, %s4
  $region1: #{tpu_custom_call.1} parent=0
    #allocation2 [shape = 'u8[8192]{0}', space=vmem, size = 0x2000, scoped, tag = 'input window, operand 0, single buffered']
    #allocation3 [shape = 's32[1]{0}', space=sflag, size = 0x4, scoped, tag = 'scoped memory for tpu_custom_call.1']
    #allocation4 [shape = 's32[1]{0}', space=sflag, size = 0x4, scoped, tag = 'scoped memory for tpu_custom_call.1']
    #allocation5 [shape = 'u8[65536]{0}', space=vmem, size = 0x10000, scoped, tag = 'input window, operand 1, single buffered']
    #allocation6 [shape = 's32[1]{0}', space=sflag, size = 0x4, scoped, tag = 'scoped memory for tpu_custom_call.1']
    #allocation7 [shape = 'u8[8192]{0}', space=vmem, size = 0x2000, scoped, tag = 'output window, operand 0, single buffered']
    %8 = vsyncpa [#allocation3], 0
    %9 = vsyncpa [#allocation6], 0
    %10 = vsyncpa [#allocation4], 0
    // Predicated region
    $region2: #{tpu_custom_call.1} parent=1 // pred_check
      _
    $region3: #{tpu_custom_call.1} parent=1 // pred_check_branch
      %12 = sbr.rel (0) target = $region5
    $region4: #{tpu_custom_call.1} parent=1 // pred_region
      %14 = vsyncadd [#allocation3], 0
      %s15 = sshll.u32 %s0, 4
      %s16 = int_to_ptr.hbm [resolvable:$true] %s15
      %s17 = sshll.u32 [#allocation2], 4
      %s18 = int_to_ptr.vmem [resolvable:$true] %s17
      %23 = dma.hbm_to_vmem [thread:$0]  %s16, 256, %s18, [#allocation3], 128, 128, 8
    $region5: #{tpu_custom_call.1} parent=1 // pred_fallthru
      _
    // Predicated region
    $region6: #{tpu_custom_call.1} parent=1 // pred_check
      _
    $region7: #{tpu_custom_call.1} parent=1 // pred_check_branch
      %25 = sbr.rel (0) target = $region9
    $region8: #{tpu_custom_call.1} parent=1 // pred_region
      %27 = vsyncadd [#allocation6], 0
      %s28 = sshll.u32 %s1, 4
      %s29 = int_to_ptr.hbm [resolvable:$true] %s28
      %s30 = sshll.u32 [#allocation5], 4
      %s31 = int_to_ptr.vmem [resolvable:$true] %s30
      %36 = dma.hbm_to_vmem [thread:$0]  %s29, 2048, %s31, [#allocation6], 128, 128, 8
    $region9: #{tpu_custom_call.1} parent=1 // pred_fallthru
      _
    // Predicated region
    $region10: #{tpu_custom_call.1} parent=1 // pred_check
      _
    $region11: #{tpu_custom_call.1} parent=1 // pred_check_branch
      %38 = sbr.rel (0) target = $region13
    $region12: #{tpu_custom_call.1} parent=1 // pred_region
      _
    $region13: #{tpu_custom_call.1} parent=1 // pred_fallthru
      _
    // Predicated region
    $region14: #{tpu_custom_call.1} parent=1 // pred_check
      _
    $region15: #{tpu_custom_call.1} parent=1 // pred_check_branch
      %40 = sbr.rel (0) target = $region17
    $region16: #{tpu_custom_call.1} parent=1 // pred_region
      %42 = dma.done [#allocation3], 256
    $region17: #{tpu_custom_call.1} parent=1 // pred_fallthru
      _
    // Predicated region
    $region18: #{tpu_custom_call.1} parent=1 // pred_check
      _
    $region19: #{tpu_custom_call.1} parent=1 // pred_check_branch
      %44 = sbr.rel (0) target = $region21
    $region20: #{tpu_custom_call.1} parent=1 // pred_region
      %46 = dma.done [#allocation6], 2048
    $region21: #{tpu_custom_call.1} parent=1 // pred_fallthru
      _
    %p47 = scmp.eq.s32.totalorder 0, 0
    // Predicated region
    $region22: #{tpu_custom_call.1} parent=1 // pred_check
      %p48 = pneg %p47
    $region23: #{tpu_custom_call.1} parent=1 // pred_check_branch
      %50 = sbr.rel (%p48) target = $region25
    $region24: #{tpu_custom_call.1} parent=1 // pred_region
      %51 = vst [vmem:[#allocation7] sm:$0xff] 0.0
      %52 = vst [vmem:[#allocation7 + $0x8] sm:$0xff] 0.0
    $region25: #{tpu_custom_call.1} parent=1 // pred_fallthru
      _
    %v53 = vld [vmem:[#allocation7] sm:$0xff]
    %v54 = vld [vmem:[#allocation7 + $0x8] sm:$0xff]
    %v55 = vld [vmem:[#allocation2] sm:$0xff]
    %v56 = vld [vmem:[#allocation2 + $0x8] sm:$0xff]
    %v57 = vld [vmem:[#allocation5] sm:$0xff]
    %v58 = vld [vmem:[#allocation5 + $0x8] sm:$0xff]
    %v59 = vld [vmem:[#allocation5 + $0x10] sm:$0xff]
    %v60 = vld [vmem:[#allocation5 + $0x18] sm:$0xff]
    %v61 = vld [vmem:[#allocation5 + $0x20] sm:$0xff]
    %v62 = vld [vmem:[#allocation5 + $0x28] sm:$0xff]
    %v63 = vld [vmem:[#allocation5 + $0x30] sm:$0xff]
    %v64 = vld [vmem:[#allocation5 + $0x38] sm:$0xff]
    %v65 = vld [vmem:[#allocation5 + $0x40] sm:$0xff]
    %v66 = vld [vmem:[#allocation5 + $0x48] sm:$0xff]
    %v67 = vld [vmem:[#allocation5 + $0x50] sm:$0xff]
    %v68 = vld [vmem:[#allocation5 + $0x58] sm:$0xff]
    %v69 = vld [vmem:[#allocation5 + $0x60] sm:$0xff]
    %v70 = vld [vmem:[#allocation5 + $0x68] sm:$0xff]
    %v71 = vld [vmem:[#allocation5 + $0x70] sm:$0xff]
    %v72 = vld [vmem:[#allocation5 + $0x78] sm:$0xff]
    %73 = vmatpush.xpose.msra.mxu0 %v72
    %74 = vmatpush.xpose.msra.mxu0 %v71
    %75 = vmatpush.xpose.msra.mxu0 %v70
    %76 = vmatpush.xpose.msra.mxu0 %v69
    %77 = vmatpush.xpose.msra.mxu0 %v68
    %78 = vmatpush.xpose.msra.mxu0 %v67
    %79 = vmatpush.xpose.msra.mxu0 %v66
    %80 = vmatpush.xpose.msra.mxu0 %v65
    %81 = vmatpush.xpose.msra.mxu0 %v64
    %82 = vmatpush.xpose.msra.mxu0 %v63
    %83 = vmatpush.xpose.msra.mxu0 %v62
    %84 = vmatpush.xpose.msra.mxu0 %v61
    %85 = vmatpush.xpose.msra.mxu0 %v60
    %86 = vmatpush.xpose.msra.mxu0 %v59
    %87 = vmatpush.xpose.msra.mxu0 %v58
    %88 = vmatpush.xpose.msra.mxu0 %v57
    %89 = vmatmul.f32.gmra.mxu0 %v55
    %v90 = vpop.f32.mrf.mxu0
    %v91 = vadd.f32 0.0, %v90
    %92 = vmatmul.f32.gmra.mxu0 %v56
    %v93 = vpop.f32.mrf.mxu0
    %v94 = vadd.f32 0.0, %v93
    %95 = vdwg.mxu0
    %v96 = vadd.f32 %v53, %v91
    %v97 = vadd.f32 %v54, %v94
    %98 = vst [vmem:[#allocation7] sm:$0xff] %v96
    %99 = vst [vmem:[#allocation7 + $0x8] sm:$0xff] %v97
    // Predicated region
    $region26: #{tpu_custom_call.1} parent=1 // pred_check
      %p100 = pneg %p47
    $region27: #{tpu_custom_call.1} parent=1 // pred_check_branch
      %102 = sbr.rel (%p100) target = $region29
    $region28: #{tpu_custom_call.1} parent=1 // pred_region
      %v103 = vld [vmem:[#allocation7] sm:$0xff]
      %v104 = vld [vmem:[#allocation7 + $0x8] sm:$0xff]
      %v105 = vld [vmem:[%s2] sm:$0x1]
      %v107 = vperm.slane %v105, 0
      %v109 = vadd.f32 %v103, %v107
      %v110 = vadd.f32 %v104, %v107
      %111 = vst [vmem:[#allocation7] sm:$0xff] %v109
      %112 = vst [vmem:[#allocation7 + $0x8] sm:$0xff] %v110
    $region29: #{tpu_custom_call.1} parent=1 // pred_fallthru
      _
    // Predicated region
    $region30: #{tpu_custom_call.1} parent=1 // pred_check
      _
    $region31: #{tpu_custom_call.1} parent=1 // pred_check_branch
      %114 = sbr.rel (0) target = $region33
    $region32: #{tpu_custom_call.1} parent=1 // pred_region
      %116 = vsyncadd [#allocation4], 0
      %s117 = sshll.u32 [#allocation7], 4
      %s118 = int_to_ptr.vmem [resolvable:$true] %s117
      %s119 = sshll.u32 %s3, 4
      %s120 = int_to_ptr.hbm [resolvable:$true] %s119
      %125 = dma.vmem_to_hbm [thread:$0]  %s118, 256, %s120, [#allocation4], 128, 128, 8
    $region33: #{tpu_custom_call.1} parent=1 // pred_fallthru
      _
    // Predicated region
    $region34: #{tpu_custom_call.1} parent=1 // pred_check
      _
    $region35: #{tpu_custom_call.1} parent=1 // pred_check_branch
      %127 = sbr.rel (0) target = $region37
    $region36: #{tpu_custom_call.1} parent=1 // pred_region
      %129 = dma.done [#allocation4], 256
    $region37: #{tpu_custom_call.1} parent=1 // pred_fallthru
      _
    %130 = vsyncpa [#allocation3], 1
    %131 = vsyncpa [#allocation6], 1
    %132 = vsyncpa [#allocation4], 1

</llo_original>
